<compile_context>
chip_gen: v5e
topology: v5e:2x2
jax: 0.10.0
libtpu: 0.0.40
codegen_flags: <defaults>
</compile_context>

<pallas_src>
import math

import jax
import jax.numpy as jnp
from jax.experimental import pallas as pl
from jax.experimental.pallas import tpu as pltpu


def _round_up(x, m):
    return (x + m - 1) // m * m


def _support_matmul_kernel(s_ref, t_ref, o_ref, acc_ref):
    """One (support r, row-tile m, k-tile) grid step.

    s_ref:   (TM, TK) support tile of support r          (compute dtype)
    t_ref:   (TK, Dp) transformed-feature slab for r      (compute dtype)
    o_ref:   (TM, Dp) output slab = cols [r*Dp, (r+1)*Dp) (f32, lane dense)
    acc_ref: (TM, Dp) f32 accumulator scratch (lives across the K steps)
    """
    k = pl.program_id(2)

    @pl.when(k == 0)
    def _():
        acc_ref[...] = jnp.zeros_like(acc_ref)

    acc_ref[...] += jnp.dot(s_ref[...], t_ref[...],
                            preferred_element_type=jnp.float32)

    @pl.when(k == pl.num_programs(2) - 1)
    def _():
        o_ref[...] = acc_ref[...].astype(o_ref.dtype)


def _stacked_support_matmul(sup_p, t_p, *, tm, tk, dp):
    """out[:, r*dp:(r+1)*dp] = sup_p[r] @ t_p[:, r*dp:(r+1)*dp]  for all r.

    sup_p: (R, Mp, Kp) padded dense supports (Mp % tm == 0, Kp % tk == 0)
    t_p:   (Kp, R*dp)  padded transformed features, one dp-wide slab per r
    returns: (Mp, R*dp) float32
    """
    R, Mp, Kp = sup_p.shape
    assert t_p.shape == (Kp, R * dp)
    grid = (R, Mp // tm, Kp // tk)

    itm_s = jnp.dtype(sup_p.dtype).itemsize
    itm_t = jnp.dtype(t_p.dtype).itemsize
    need = (2 * tm * tk * itm_s      # double-buffered support tile
            + 2 * tk * dp * itm_t    # double-buffered T slab
            + 2 * tm * dp * 4        # double-buffered f32 output tile
            + tm * dp * 4)           # accumulator scratch
    # Raise scoped VMEM above the 16/32 MiB defaults but stay <= 48 MiB so the
    # same setting is valid on v7x (64 MiB/TC) as well as v5e/v6e.
    vmem_limit = int(min(max(2 * need + (8 << 20), 32 << 20), 48 << 20))

    cost = pl.CostEstimate(
        flops=int(2 * R * Mp * Kp * dp),
        transcendentals=0,
        bytes_accessed=int(sup_p.size * itm_s
                           + t_p.size * itm_t * (Mp // tm)
                           + Mp * R * dp * 4),
    )

    return pl.pallas_call(
        _support_matmul_kernel,
        out_shape=jax.ShapeDtypeStruct((Mp, R * dp), jnp.float32),
        grid_spec=pltpu.PrefetchScalarGridSpec(
            num_scalar_prefetch=0,
            grid=grid,
            in_specs=[
                # one (tm, tk) tile of support r
                pl.BlockSpec((None, tm, tk), lambda r, m, k: (r, m, k)),
                # the dp-wide (lane dense) slab of T for support r
                pl.BlockSpec((tk, dp), lambda r, m, k: (k, r)),
            ],
            # lane-dense concatenated output written in place (no transpose).
            out_specs=pl.BlockSpec((tm, dp), lambda r, m, k: (m, r)),
            scratch_shapes=[pltpu.VMEM((tm, dp), jnp.float32)],
        ),
        compiler_params=pltpu.CompilerParams(
            dimension_semantics=("parallel", "parallel", "arbitrary"),
            vmem_limit_bytes=vmem_limit,
        ),
        cost_estimate=cost,
    )(sup_p, t_p)


def _gcn_pass(supports, t, *, num_support, d_sub, dp, compute_dtype,
              tm_max=512, tk_max=1024):
    """concat_r( supports[r] @ t[:, r*d_sub:(r+1)*d_sub] )  ->  (M, R*d_sub)."""
    R = num_support
    sup = jnp.stack(supports, axis=0)          # (R, M, K)
    _, M, K = sup.shape

    tm = min(tm_max, _round_up(M, 8))          # sublane-aligned row tile
    tk = min(tk_max, _round_up(K, 128))        # lane-aligned reduction tile
    Mp = _round_up(M, tm)
    Kp = _round_up(K, tk)

    sup_p = jnp.pad(sup, ((0, 0), (0, Mp - M), (0, Kp - K))
                    ).astype(compute_dtype)

    # (K, R*d_sub) -> (Kp, R*dp): pad each per-support slab up to dp lanes.
    t3 = t.reshape(K, R, d_sub)
    t3 = jnp.pad(t3, ((0, Kp - K), (0, 0), (0, dp - d_sub)))
    t_p = t3.reshape(Kp, R * dp).astype(compute_dtype)

    out_p = _stacked_support_matmul(sup_p, t_p, tm=tm, tk=tk, dp=dp)

    out = out_p[:M]
    if dp != d_sub:
        out = out.reshape(M, R, dp)[:, :, :d_sub].reshape(M, R * d_sub)
    return out


class StackGCNEncoderPallas:
    """JAX/Pallas re-implementation of the PyTorch StackGCNEncoder forward."""

    def __init__(self, input_dim, output_dim, num_support, dropout=0.0,
                 use_bias=False, activation=lambda x: x, key=None,
                 compute_dtype=jnp.bfloat16):
        assert output_dim % num_support == 0
        self.input_dim = input_dim
        self.output_dim = output_dim
        self.num_support = num_support
        self.use_bias = use_bias
        self.activation = activation
        self.compute_dtype = compute_dtype
        if key is None:
            key = jax.random.PRNGKey(0)
        # xavier_uniform_ on (input_dim, output_dim)
        bound = math.sqrt(6.0 / (input_dim + output_dim))
        self.weight = jax.random.uniform(
            key, (input_dim, output_dim), dtype=jnp.float32,
            minval=-bound, maxval=bound)
        if use_bias:
            self.bias_user = jnp.zeros((output_dim,), jnp.float32)
            self.bias_item = jnp.zeros((output_dim,), jnp.float32)
        # NOTE: the torch module constructs InputDropout but never calls it in
        # forward(), so it is intentionally omitted here.
        # TODO(synk): real deployments use sparse supports; a gather /
        # segment-sum formulation (scalar-prefetch row offsets) would match
        # torch.sparse.mm semantics instead of densifying the adjacency.

    def __call__(self, user_supports, item_supports, user_inputs, item_inputs,
                 scale=0.1):
        # `scale` is accepted but unused — exactly as in the torch forward.
        assert len(user_supports) == len(item_supports) == self.num_support
        R = self.num_support
        d_sub = self.output_dim // R
        dp = _round_up(d_sub, 128)

        # Hoisted feature transform: one tiny D_in x D_out GEMM per side,
        # done by XLA in f32, then fed to the Pallas GEMM in compute dtype.
        t_user = jnp.dot(user_inputs.astype(jnp.float32), self.weight)
        t_item = jnp.dot(item_inputs.astype(jnp.float32), self.weight)

        # user_hidden[:, r] = user_supports[r] @ (item_inputs @ W_r)
        user_hidden = _gcn_pass(user_supports, t_item, num_support=R,
                                d_sub=d_sub, dp=dp,
                                compute_dtype=self.compute_dtype)
        # item_hidden[:, r] = item_supports[r] @ (user_inputs @ W_r)
        item_hidden = _gcn_pass(item_supports, t_user, num_support=R,
                                d_sub=d_sub, dp=dp,
                                compute_dtype=self.compute_dtype)

        # Matches the torch code: activation first, then (optional) bias.
        user_outputs = self.activation(user_hidden)
        item_outputs = self.activation(item_hidden)
        if self.use_bias:
            user_outputs = user_outputs + self.bias_user
            item_outputs = item_outputs + self.bias_item
        return user_outputs, item_outputs


if __name__ == "__main__":
    # Small deterministic example shapes (dense stand-ins for the normalized
    # sparse adjacency matrices of the ml-100k bipartite graph).
    num_users, num_items = 96, 72
    input_dim = 32
    num_support = 5
    output_dim = 80            # output_dim % num_support == 0 -> D_sub = 16

    key = jax.random.PRNGKey(0)
    ks = jax.random.split(key, 3 + 2 * num_support)

    user_inputs = jax.random.normal(ks[0], (num_users, input_dim), jnp.float32)
    item_inputs = jax.random.normal(ks[1], (num_items, input_dim), jnp.float32)

    user_supports = [
        jax.random.uniform(ks[3 + r], (num_users, num_items), jnp.float32)
        for r in range(num_support)
    ]
    item_supports = [
        jax.random.uniform(ks[3 + num_support + r], (num_items, num_users),
                           jnp.float32)
        for r in range(num_support)
    ]

    enc = StackGCNEncoderPallas(input_dim, output_dim, num_support,
                                use_bias=False, activation=lambda x: x,
                                key=ks[2])

    user_out, item_out = enc(user_supports, item_supports,
                             user_inputs, item_inputs)
    jax.block_until_ready((user_out, item_out))

    # Pure-JAX reference using the same bf16 casts (f32 accumulation).
    cd = enc.compute_dtype
    d_sub = output_dim // num_support
    t_user_ref = jnp.dot(user_inputs, enc.weight).astype(cd)
    t_item_ref = jnp.dot(item_inputs, enc.weight).astype(cd)
    u_ref, i_ref = [], []
    for r in range(num_support):
        cols = slice(r * d_sub, (r + 1) * d_sub)
        u_ref.append(jnp.dot(user_supports[r].astype(cd), t_item_ref[:, cols],
                             preferred_element_type=jnp.float32))
        i_ref.append(jnp.dot(item_supports[r].astype(cd), t_user_ref[:, cols],
                             preferred_element_type=jnp.float32))
    u_ref = jnp.concatenate(u_ref, axis=1)
    i_ref = jnp.concatenate(i_ref, axis=1)

    assert user_out.shape == (num_users, output_dim)
    assert item_out.shape == (num_items, output_dim)
    assert jnp.allclose(user_out, u_ref, atol=1e-2, rtol=1e-2), \
        float(jnp.max(jnp.abs(user_out - u_ref)))
    assert jnp.allclose(item_out, i_ref, atol=1e-2, rtol=1e-2), \
        float(jnp.max(jnp.abs(item_out - i_ref)))

    print("KERNEL_OK")
</pallas_src>

<mosaic_0001>
module attributes {stable_mosaic.version = 11 : i64} {
  func.func @_support_matmul_kernel(%arg0: i32, %arg1: i32, %arg2: i32, %arg3: memref<1x96x128xbf16, #tpu.memory_space<vmem>>, %arg4: memref<128x128xbf16, #tpu.memory_space<vmem>>, %arg5: memref<96x128xf32, #tpu.memory_space<vmem>>, %arg6: memref<96x128xf32, #tpu.memory_space<vmem>>) attributes {dimension_semantics = [#tpu.dimension_semantics<parallel>, #tpu.dimension_semantics<parallel>, #tpu.dimension_semantics<arbitrary>], iteration_bounds = array<i64: 5, 1, 1>, scalar_prefetch = 0 : i64, scratch_operands = 1 : i64, tpu.core_type = #tpu.core_type<tc>, window_params = [{transform_indices = @transform_0, window_bounds = array<i64: 1, 96, 128>}, {transform_indices = @transform_1, window_bounds = array<i64: 128, 128>}, {transform_indices = @transform_2, window_bounds = array<i64: 96, 128>}]} {
    %c0_i32 = arith.constant 0 : i32
    %0 = arith.cmpi eq, %arg2, %c0_i32 : i32
    %1 = arith.extui %0 : i1 to i32
    %c0_i32_0 = arith.constant 0 : i32
    %2 = arith.cmpi ne, %1, %c0_i32_0 : i32
    scf.if %2 {
      %cst_11 = arith.constant 0.000000e+00 : f32
      %13 = vector.broadcast %cst_11 : f32 to vector<96x128xf32>
      %c0_12 = arith.constant 0 : index
      %c0_13 = arith.constant 0 : index
      %14 = vector.load %arg6[%c0_12, %c0_13] : memref<96x128xf32, #tpu.memory_space<vmem>>, vector<96x128xf32>
      tpu.vector_store %arg6[%c0_12, %c0_13], %13 {strides = array<i32>} : memref<96x128xf32, #tpu.memory_space<vmem>>, vector<96x128xf32>,
    } else {
    }
    %c0 = arith.constant 0 : index
    %c0_1 = arith.constant 0 : index
    %3 = vector.load %arg6[%c0, %c0_1] : memref<96x128xf32, #tpu.memory_space<vmem>>, vector<96x128xf32>
    %c0_2 = arith.constant 0 : index
    %c0_3 = arith.constant 0 : index
    %c0_4 = arith.constant 0 : index
    %4 = vector.load %arg3[%c0_2, %c0_3, %c0_4] : memref<1x96x128xbf16, #tpu.memory_space<vmem>>, vector<1x96x128xbf16>
    %5 = vector.shape_cast %4 : vector<1x96x128xbf16> to vector<96x128xbf16>
    %c0_5 = arith.constant 0 : index
    %c0_6 = arith.constant 0 : index
    %6 = vector.load %arg4[%c0_5, %c0_6] : memref<128x128xbf16, #tpu.memory_space<vmem>>, vector<128x128xbf16>
    %cst = arith.constant dense<0.000000e+00> : vector<96x128xf32>
    %7 = tpu.matmul %5, %6, %cst {dimension_numbers = #tpu.dot_dimension_numbers<[1], [0], [0], [1], [0, 0, 1, 1], [], []>} : vector<96x128xbf16>, vector<128x128xbf16>, vector<96x128xf32> -> vector<96x128xf32>
    %8 = arith.addf %3, %7 : vector<96x128xf32>
    %c0_7 = arith.constant 0 : index
    %c0_8 = arith.constant 0 : index
    %9 = vector.load %arg6[%c0_7, %c0_8] : memref<96x128xf32, #tpu.memory_space<vmem>>, vector<96x128xf32>
    tpu.vector_store %arg6[%c0_7, %c0_8], %8 {strides = array<i32>} : memref<96x128xf32, #tpu.memory_space<vmem>>, vector<96x128xf32>,
    %c0_i32_9 = arith.constant 0 : i32
    %10 = arith.cmpi eq, %arg2, %c0_i32_9 : i32
    %11 = arith.extui %10 : i1 to i32
    %c0_i32_10 = arith.constant 0 : i32
    %12 = arith.cmpi ne, %11, %c0_i32_10 : i32
    scf.if %12 {
      %c0_11 = arith.constant 0 : index
      %c0_12 = arith.constant 0 : index
      %13 = vector.load %arg6[%c0_11, %c0_12] : memref<96x128xf32, #tpu.memory_space<vmem>>, vector<96x128xf32>
      %c0_13 = arith.constant 0 : index
      %c0_14 = arith.constant 0 : index
      %14 = vector.load %arg5[%c0_13, %c0_14] : memref<96x128xf32, #tpu.memory_space<vmem>>, vector<96x128xf32>
      tpu.vector_store %arg5[%c0_13, %c0_14], %13 {strides = array<i32>} : memref<96x128xf32, #tpu.memory_space<vmem>>, vector<96x128xf32>,
    } else {
    }
    return
  }
  func.func @transform_0(%arg0: i32, %arg1: i32, %arg2: i32) -> (i32, i32, i32) {
    %c0_i32 = arith.constant 0 : i32
    return %arg0, %arg1, %arg2 : i32, i32, i32
  }
  func.func @transform_1(%arg0: i32, %arg1: i32, %arg2: i32) -> (i32, i32) {
    %c0_i32 = arith.constant 0 : i32
    return %arg2, %arg0 : i32, i32
  }
  func.func @transform_2(%arg0: i32, %arg1: i32, %arg2: i32) -> (i32, i32) {
    %c0_i32 = arith.constant 0 : i32
    return %arg1, %arg0 : i32, i32
  }
}

</mosaic_0001>

<llo_original>
// kernel: tpu_custom_call.1
$region0: #{tpu_custom_call.1}
  #allocation0 [shape = 'u32[]', space=smem, size = 0x4, offset = 0x4, fixed_abs, tag = 'smem constant byte address 0x4 - core index']
  #allocation1 [shape = 'u32[72,128]{1,0:T(1,128)}', space=vmem, size = 0x9000, scoped, tag = 'internal scratch']
  #allocation2 [shape = 'f32[96,128]{1,0:T(8,128)}', space=vmem, size = 0xc000, scoped, tag = 'scratch operand']
  %s0 = inlined_call_operand.hbm [shape: bf16[5,96,128], index: 0, kind: input, shape index: {}]
  %s1 = inlined_call_operand.hbm [shape: bf16[128,640], index: 1, kind: input, shape index: {}]
  %s2 = inlined_call_operand.hbm [shape: f32[96,640], index: 2, kind: output, shape index: {}]
  %s3 = sld [smem:[#allocation0]]
  $region57: #{tpu_custom_call.1} parent=0
    _
  %s5 = ssub.s32 1, %s3
  %s6 = scalar_select 0, %s5, %s3
  $region1: #{tpu_custom_call.1} parent=0
    #allocation3 [shape = 'u8[49152]{0}', space=vmem, size = 0xc000, scoped, tag = 'input window, operand 0']
    #allocation4 [shape = 's32[2]{0}', space=sflag, size = 0x8, scoped, tag = 'scoped memory for tpu_custom_call.1']
    #allocation5 [shape = 's32[2]{0}', space=sflag, size = 0x8, scoped, tag = 'scoped memory for tpu_custom_call.1']
    #allocation6 [shape = 'u8[65536]{0}', space=vmem, size = 0x10000, scoped, tag = 'input window, operand 1']
    #allocation7 [shape = 's32[2]{0}', space=sflag, size = 0x8, scoped, tag = 'scoped memory for tpu_custom_call.1']
    #allocation8 [shape = 'u8[98304]{0}', space=vmem, size = 0x18000, scoped, tag = 'output window, operand 0']
    %7 = vsyncpa [#allocation4], 0
    %s8 = scalar_lea.sflag [#allocation4], 1
    %9 = vsyncpa %s8, 0
    %10 = vsyncpa [#allocation7], 0
    %s11 = scalar_lea.sflag [#allocation7], 1
    %12 = vsyncpa %s11, 0
    %13 = vsyncpa [#allocation5], 0
    %s14 = scalar_lea.sflag [#allocation5], 1
    %15 = vsyncpa %s14, 0
    loop: start=0, step=1, limit=7
    $region2: #{tpu_custom_call.1} parent=1 // loop_pre_header
      _
    $region3: #{tpu_custom_call.1} parent=1 // loop_header
      %s17 = sphi 0, %s21
      %p18 = scmp.ge.s32.totalorder %s17, 7
      %s24 = sphi 0, %s43
      %s25 = sphi 0, %s39
      %s26 = sphi 0, %s35
      %s27 = sphi 0, %s24
      %s28 = sphi 0, %s25
      %s29 = sphi 0, %s26
      %s30 = sphi 0, %s27
      %s31 = sphi 0, %s28
      %s32 = sphi 0, %s29
      %s50 = sphi 0, %s52
      %s53 = sphi 0, %s50
      %s54 = sphi 0, %s53
      %s70 = sphi 0, %s54
      %s78 = sphi 0, %s80
      %s81 = sphi 0, %s78
      %s82 = sphi 0, %s81
      %s98 = sphi 0, %s82
      %s106 = sphi 0, %s108
      %s109 = sphi 0, %s106
      %s110 = sphi 0, %s109
      %s126 = sphi 0, %s110
    $region4: #{tpu_custom_call.1} parent=1 // loop_header_branch
      %20 = sbr.rel (%p18) target = $region8
    $region5: #{tpu_custom_call.1} parent=1 // loop_body
      %s22 = ssub.s32 %s17, 1
      %s23 = ssub.s32 %s17, 2
      %s33 = sadd.s32 1, %s26
      %p34 = scmp.ge.s32.totalorder %s33, 1
      %s35 = scalar_select %p34, 0, %s33
      %s36 = sadd.s32 1, %s25
      %s37 = scalar_select %p34, %s36, %s25
      %p38 = scmp.ge.s32.totalorder %s37, 1
      %s39 = scalar_select %p38, 0, %s37
      %s40 = sadd.s32 1, %s24
      %s41 = scalar_select %p38, %s40, %s24
      %p42 = scmp.ge.s32.totalorder %s41, 5
      %s43 = scalar_select %p42, 0, %s41
      %s44 = ssub.s32 %s24, %s43
      %s45 = ssub.s32 %s25, %s39
      %s46 = sor.u32 %s44, %s45
      %s47 = ssub.s32 %s26, %s35
      %s48 = sor.u32 %s46, %s47
      %p49 = scmp.eq.s32.totalorder %s48, 0
      %s51 = sadd.s32 %s50, 1
      %s52 = scalar_select %p49, %s50, %s51
      %p55 = pneg %p49
      %p56 = scmp.eq.s32.totalorder %s17, 4
      %p57 = por %p55, %p56
      %p58 = scmp.ne.s32.totalorder %s50, %s53
      %p59 = scmp.eq.s32.totalorder %s17, 0
      %p60 = por %p58, %p59
      %p61 = scmp.ne.s32.totalorder %s50, %s53
      %p62 = scmp.eq.s32.totalorder %s22, 4
      %p63 = por %p61, %p62
      %p64 = scmp.ne.s32.totalorder %s53, %s54
      %p65 = scmp.eq.s32.totalorder %s22, 0
      %p66 = por %p64, %p65
      %p67 = scmp.ne.s32.totalorder %s53, %s54
      %p68 = scmp.eq.s32.totalorder %s23, 4
      %p69 = por %p67, %p68
      %p71 = scmp.ne.s32.totalorder %s54, %s70
      %p72 = scmp.eq.s32.totalorder %s23, 0
      %p73 = por %p71, %p72
      %s74 = ssub.s32 %s26, %s35
      %s75 = ssub.s32 %s24, %s43
      %s76 = sor.u32 %s74, %s75
      %p77 = scmp.eq.s32.totalorder %s76, 0
      %s79 = sadd.s32 %s78, 1
      %s80 = scalar_select %p77, %s78, %s79
      %p83 = pneg %p77
      %p84 = scmp.eq.s32.totalorder %s17, 4
      %p85 = por %p83, %p84
      %p86 = scmp.ne.s32.totalorder %s78, %s81
      %p87 = scmp.eq.s32.totalorder %s17, 0
      %p88 = por %p86, %p87
      %p89 = scmp.ne.s32.totalorder %s78, %s81
      %p90 = scmp.eq.s32.totalorder %s22, 4
      %p91 = por %p89, %p90
      %p92 = scmp.ne.s32.totalorder %s81, %s82
      %p93 = scmp.eq.s32.totalorder %s22, 0
      %p94 = por %p92, %p93
      %p95 = scmp.ne.s32.totalorder %s81, %s82
      %p96 = scmp.eq.s32.totalorder %s23, 4
      %p97 = por %p95, %p96
      %p99 = scmp.ne.s32.totalorder %s82, %s98
      %p100 = scmp.eq.s32.totalorder %s23, 0
      %p101 = por %p99, %p100
      %s102 = ssub.s32 %s25, %s39
      %s103 = ssub.s32 %s24, %s43
      %s104 = sor.u32 %s102, %s103
      %p105 = scmp.eq.s32.totalorder %s104, 0
      %s107 = sadd.s32 %s106, 1
      %s108 = scalar_select %p105, %s106, %s107
      %p111 = pneg %p105
      %p112 = scmp.eq.s32.totalorder %s17, 4
      %p113 = por %p111, %p112
      %p114 = scmp.ne.s32.totalorder %s106, %s109
      %p115 = scmp.eq.s32.totalorder %s17, 0
      %p116 = por %p114, %p115
      %p117 = scmp.ne.s32.totalorder %s106, %s109
      %p118 = scmp.eq.s32.totalorder %s22, 4
      %p119 = por %p117, %p118
      %p120 = scmp.ne.s32.totalorder %s109, %s110
      %p121 = scmp.eq.s32.totalorder %s22, 0
      %p122 = por %p120, %p121
      %p123 = scmp.ne.s32.totalorder %s109, %s110
      %p124 = scmp.eq.s32.totalorder %s23, 4
      %p125 = por %p123, %p124
      %p127 = scmp.ne.s32.totalorder %s110, %s126
      %p128 = scmp.eq.s32.totalorder %s23, 0
      %p129 = por %p127, %p128
      %p130 = scmp.le.s32.totalorder 1, %s17
      %p131 = scmp.lt.s32.totalorder %s17, 6
      %p132 = pnand %p130, %p131
      %p133 = pneg %p132
      // Predicated region
      $region9: #{tpu_custom_call.1} parent=5 // pred_check
        _
      $region10: #{tpu_custom_call.1} parent=5 // pred_check_branch
        %135 = sbr.rel (%p132) target = $region12
      $region11: #{tpu_custom_call.1} parent=5 // pred_region
        %s136 = ssub.s32 %s17, 1
      $region12: #{tpu_custom_call.1} parent=5 // pred_fallthru
        _
      %p137 = scmp.lt.s32.totalorder %s17, 5
      // Predicated region
      $region13: #{tpu_custom_call.1} parent=5 // pred_check
        %p138 = pneg %p137
      $region14: #{tpu_custom_call.1} parent=5 // pred_check_branch
        %140 = sbr.rel (%p138) target = $region16
      $region15: #{tpu_custom_call.1} parent=5 // pred_region
        // Predicated region
        $region17: #{tpu_custom_call.1} parent=15 // pred_check
          %p141 = pneg %p60
        $region18: #{tpu_custom_call.1} parent=15 // pred_check_branch
          %143 = sbr.rel (%p141) target = $region20
        $region19: #{tpu_custom_call.1} parent=15 // pred_region
          %s144 = sand.u32 %s50, 1
          %s145 = scalar_lea.sflag [#allocation4], %s144
          %s146 = sand.u32 %s50, 1
          %s147 = smul.addr %s146, 48
          %s148 = scalar_lea.vmem [#allocation3], %s147
          %s149 = smul.u32 12, %s25
          %151 = vsyncadd %s145, 0
          %s152 = sadd.s32 %s26, %s149
          %s153 = smul.addr %s24, 12
          %s154 = sadd.s32 %s152, %s153
          %s155 = smul.addr %s154, 4
          %s156 = scalar_lea.hbm %s0, %s155
          %s157 = sshll.u32 %s156, 4
          %s158 = int_to_ptr.hbm [resolvable:$true] %s157
          %s159 = sshll.u32 %s148, 4
          %s160 = int_to_ptr.vmem [resolvable:$true] %s159
          %165 = dma.hbm_to_vmem [thread:$0]  %s158, 768, %s160, %s145, 64, 64, 4
        $region20: #{tpu_custom_call.1} parent=15 // pred_fallthru
          _
        // Predicated region
        $region21: #{tpu_custom_call.1} parent=15 // pred_check
          %p166 = pneg %p88
        $region22: #{tpu_custom_call.1} parent=15 // pred_check_branch
          %168 = sbr.rel (%p166) target = $region24
        $region23: #{tpu_custom_call.1} parent=15 // pred_region
          %s169 = sand.u32 %s78, 1
          %s170 = scalar_lea.sflag [#allocation7], %s169
          %s171 = sand.u32 %s78, 1
          %s172 = smul.addr %s171, 64
          %s173 = scalar_lea.vmem [#allocation6], %s172
          %s174 = smul.u32 16, %s26
          %176 = vsyncadd %s170, 0
          %s177 = smul.addr %s174, 5
          %s178 = sadd.s32 %s24, %s177
          %s179 = smul.addr %s178, 4
          %s180 = scalar_lea.hbm %s1, %s179
          %s181 = sshll.u32 %s180, 4
          %s182 = int_to_ptr.hbm [resolvable:$true] %s181
          %s183 = sshll.u32 %s173, 4
          %s184 = int_to_ptr.vmem [resolvable:$true] %s183
          %189 = dma.hbm_to_vmem [thread:$0]  %s182, 1024, %s184, %s170, 320, 64, 4
        $region24: #{tpu_custom_call.1} parent=15 // pred_fallthru
          _
      $region16: #{tpu_custom_call.1} parent=5 // pred_fallthru
        _
      %p190 = scmp.le.s32.totalorder 1, %s17
      %p191 = scmp.lt.s32.totalorder %s17, 6
      %p192 = pnand %p190, %p191
      %p193 = pneg %p192
      // Predicated region
      $region25: #{tpu_custom_call.1} parent=5 // pred_check
        _
      $region26: #{tpu_custom_call.1} parent=5 // pred_check_branch
        %195 = sbr.rel (%p192) target = $region28
      $region27: #{tpu_custom_call.1} parent=5 // pred_region
        %s196 = ssub.s32 %s17, 1
        %s197 = sand.u32 %s53, 1
        %s198 = scalar_lea.sflag [#allocation4], %s197
        %s199 = sand.u32 %s53, 1
        %s200 = smul.addr %s199, 48
        %s201 = scalar_lea.vmem [#allocation3], %s200
        // Predicated region
        $region29: #{tpu_custom_call.1} parent=27 // pred_check
          %p202 = pneg %p66
        $region30: #{tpu_custom_call.1} parent=27 // pred_check_branch
          %204 = sbr.rel (%p202) target = $region32
        $region31: #{tpu_custom_call.1} parent=27 // pred_region
          %206 = dma.done %s198, 768
        $region32: #{tpu_custom_call.1} parent=27 // pred_fallthru
          _
        %s207 = sand.u32 %s81, 1
        %s208 = scalar_lea.sflag [#allocation7], %s207
        %s209 = sand.u32 %s81, 1
        %s210 = smul.addr %s209, 64
        %s211 = scalar_lea.vmem [#allocation6], %s210
        // Predicated region
        $region33: #{tpu_custom_call.1} parent=27 // pred_check
          %p212 = pneg %p94
        $region34: #{tpu_custom_call.1} parent=27 // pred_check_branch
          %214 = sbr.rel (%p212) target = $region36
        $region35: #{tpu_custom_call.1} parent=27 // pred_region
          %216 = dma.done %s208, 1024
        $region36: #{tpu_custom_call.1} parent=27 // pred_fallthru
          _
        %s217 = sand.u32 %s53, 1
        %s218 = scalar_lea.sflag [#allocation4], %s217
        %s219 = sand.u32 %s53, 1
        %s220 = smul.addr %s219, 48
        %s221 = scalar_lea.vmem [#allocation3], %s220
        %p222 = pneg %p66
        %p223 = pneg %p63
        %s224 = sand.u32 %s81, 1
        %s225 = scalar_lea.sflag [#allocation7], %s224
        %s226 = sand.u32 %s81, 1
        %s227 = smul.addr %s226, 64
        %s228 = scalar_lea.vmem [#allocation6], %s227
        %p229 = pneg %p94
        %p230 = pneg %p91
        %p231 = pneg %p122
        %p232 = pneg %p119
        %s233 = sand.u32 %s109, 1
        %s234 = scalar_lea.sflag [#allocation5], %s233
        %s235 = sand.u32 %s109, 1
        %s236 = smul.addr %s235, 96
        %s237 = scalar_lea.vmem [#allocation8], %s236
        %s238 = smul.u32 12, %s28
        %s239 = smul.u32 16, %s29
        %s240 = smul.u32 12, %s28
        %p241 = scmp.eq.s32.totalorder %s29, 0
        // Predicated region
        $region37: #{tpu_custom_call.1} parent=27 // pred_check
          %p242 = pneg %p241
        $region38: #{tpu_custom_call.1} parent=27 // pred_check_branch
          %244 = sbr.rel (%p242) target = $region40
        $region39: #{tpu_custom_call.1} parent=27 // pred_region
          %245 = vst [vmem:[#allocation2] sm:$0xff] 0.0
          %246 = vst [vmem:[#allocation2 + $0x8] sm:$0xff] 0.0
          %247 = vst [vmem:[#allocation2 + $0x10] sm:$0xff] 0.0
          %248 = vst [vmem:[#allocation2 + $0x18] sm:$0xff] 0.0
          %249 = vst [vmem:[#allocation2 + $0x20] sm:$0xff] 0.0
          %250 = vst [vmem:[#allocation2 + $0x28] sm:$0xff] 0.0
          %251 = vst [vmem:[#allocation2 + $0x30] sm:$0xff] 0.0
          %252 = vst [vmem:[#allocation2 + $0x38] sm:$0xff] 0.0
          %253 = vst [vmem:[#allocation2 + $0x40] sm:$0xff] 0.0
          %254 = vst [vmem:[#allocation2 + $0x48] sm:$0xff] 0.0
          %255 = vst [vmem:[#allocation2 + $0x50] sm:$0xff] 0.0
          %256 = vst [vmem:[#allocation2 + $0x58] sm:$0xff] 0.0
        $region40: #{tpu_custom_call.1} parent=27 // pred_fallthru
          _
        %v257 = vld [vmem:[#allocation2] sm:$0xff]
        %v258 = vld [vmem:[#allocation2 + $0x8] sm:$0xff]
        %v259 = vld [vmem:[#allocation2 + $0x10] sm:$0xff]
        %v260 = vld [vmem:[#allocation2 + $0x18] sm:$0xff]
        %v261 = vld [vmem:[#allocation2 + $0x20] sm:$0xff]
        %v262 = vld [vmem:[#allocation2 + $0x28] sm:$0xff]
        %v263 = vld [vmem:[#allocation2 + $0x30] sm:$0xff]
        %v264 = vld [vmem:[#allocation2 + $0x38] sm:$0xff]
        %v265 = vld [vmem:[#allocation2 + $0x40] sm:$0xff]
        %v266 = vld [vmem:[#allocation2 + $0x48] sm:$0xff]
        %v267 = vld [vmem:[#allocation2 + $0x50] sm:$0xff]
        %v268 = vld [vmem:[#allocation2 + $0x58] sm:$0xff]
        %v269 = vld [vmem:[%s201] sm:$0xf]
        %v270 = vld [vmem:[%s201 + $0x4] sm:$0xf]
        %v271 = vld [vmem:[%s201 + $0x8] sm:$0xf]
        %v272 = vld [vmem:[%s201 + $0xc] sm:$0xf]
        %v273 = vld [vmem:[%s201 + $0x10] sm:$0xf]
        %v274 = vld [vmem:[%s201 + $0x14] sm:$0xf]
        %v275 = vld [vmem:[%s201 + $0x18] sm:$0xf]
        %v276 = vld [vmem:[%s201 + $0x1c] sm:$0xf]
        %v277 = vld [vmem:[%s201 + $0x20] sm:$0xf]
        %v278 = vld [vmem:[%s201 + $0x24] sm:$0xf]
        %v279 = vld [vmem:[%s201 + $0x28] sm:$0xf]
        %v280 = vld [vmem:[%s201 + $0x2c] sm:$0xf]
        %v281 = vld [vmem:[%s211] sm:$0xf]
        %v282 = vld [vmem:[%s211 + $0x4] sm:$0xf]
        %v283 = vld [vmem:[%s211 + $0x8] sm:$0xf]
        %v284 = vld [vmem:[%s211 + $0xc] sm:$0xf]
        %v285 = vld [vmem:[%s211 + $0x10] sm:$0xf]
        %v286 = vld [vmem:[%s211 + $0x14] sm:$0xf]
        %v287 = vld [vmem:[%s211 + $0x18] sm:$0xf]
        %v288 = vld [vmem:[%s211 + $0x1c] sm:$0xf]
        %v289 = vld [vmem:[%s211 + $0x20] sm:$0xf]
        %v290 = vld [vmem:[%s211 + $0x24] sm:$0xf]
        %v291 = vld [vmem:[%s211 + $0x28] sm:$0xf]
        %v292 = vld [vmem:[%s211 + $0x2c] sm:$0xf]
        %v293 = vld [vmem:[%s211 + $0x30] sm:$0xf]
        %v294 = vld [vmem:[%s211 + $0x34] sm:$0xf]
        %v295 = vld [vmem:[%s211 + $0x38] sm:$0xf]
        %v296 = vld [vmem:[%s211 + $0x3c] sm:$0xf]
        %v309 = vunpack.c.l.b16 %v269
        %v310 = vunpack.c.l.b16 %v270
        %v311 = vunpack.c.l.b16 %v271
        %v312 = vunpack.c.l.b16 %v272
        %v313 = vunpack.c.l.b16 %v273
        %v314 = vunpack.c.l.b16 %v274
        %v315 = vunpack.c.l.b16 %v275
        %v316 = vunpack.c.l.b16 %v276
        %v317 = vunpack.c.l.b16 %v277
        %v318 = vunpack.c.l.b16 %v278
        %v319 = vunpack.c.l.b16 %v279
        %v320 = vunpack.c.l.b16 %v280
        %v321 = vpack.c.b16 %v310, %v309
        %v322 = vpack.c.b16 %v312, %v311
        %v323 = vpack.c.b16 %v314, %v313
        %v324 = vpack.c.b16 %v316, %v315
        %v325 = vpack.c.b16 %v318, %v317
        %v326 = vpack.c.b16 %v320, %v319
        %v349 = vunpack.c.l.b16 %v281
        %v350 = vunpack.c.l.b16 %v282
        %v351 = vunpack.c.l.b16 %v283
        %v352 = vunpack.c.l.b16 %v284
        %v353 = vunpack.c.l.b16 %v285
        %v354 = vunpack.c.l.b16 %v286
        %v355 = vunpack.c.l.b16 %v287
        %v356 = vunpack.c.l.b16 %v288
        %v357 = vunpack.c.l.b16 %v289
        %v358 = vunpack.c.l.b16 %v290
        %v359 = vunpack.c.l.b16 %v291
        %v360 = vunpack.c.l.b16 %v292
        %v361 = vunpack.c.l.b16 %v293
        %v362 = vunpack.c.l.b16 %v294
        %v363 = vunpack.c.l.b16 %v295
        %v364 = vunpack.c.l.b16 %v296
        %v365 = vpack.c.b16 %v350, %v349
        %v366 = vpack.c.b16 %v352, %v351
        %v367 = vpack.c.b16 %v354, %v353
        %v368 = vpack.c.b16 %v356, %v355
        %v369 = vpack.c.b16 %v358, %v357
        %v370 = vpack.c.b16 %v360, %v359
        %v371 = vpack.c.b16 %v362, %v361
        %v372 = vpack.c.b16 %v364, %v363
        %381 = vmatpush.bf16.msra.mxu0 %v372
        %382 = vmatpush.bf16.msra.mxu0 %v371
        %383 = vmatpush.bf16.msra.mxu0 %v370
        %384 = vmatpush.bf16.msra.mxu0 %v369
        %385 = vmatpush.bf16.msra.mxu0 %v368
        %386 = vmatpush.bf16.msra.mxu0 %v367
        %387 = vmatpush.bf16.msra.mxu0 %v366
        %388 = vmatpush.bf16.msra.mxu0 %v365
        %389 = vmatmul.bf16.gmra.mxu0 %v321
        %v390 = vpop.f32.mrf.mxu0
        %v391 = vadd.f32 0.0, %v390
        %v392 = vpop.f32.mrf.mxu0
        %v393 = vadd.f32 0.0, %v392
        %394 = vmatmul.bf16.gmra.mxu0 %v322
        %v395 = vpop.f32.mrf.mxu0
        %v396 = vadd.f32 0.0, %v395
        %v397 = vpop.f32.mrf.mxu0
        %v398 = vadd.f32 0.0, %v397
        %399 = vmatmul.bf16.gmra.mxu0 %v323
        %v400 = vpop.f32.mrf.mxu0
        %v401 = vadd.f32 0.0, %v400
        %v402 = vpop.f32.mrf.mxu0
        %v403 = vadd.f32 0.0, %v402
        %404 = vmatmul.bf16.gmra.mxu0 %v324
        %v405 = vpop.f32.mrf.mxu0
        %v406 = vadd.f32 0.0, %v405
        %v407 = vpop.f32.mrf.mxu0
        %v408 = vadd.f32 0.0, %v407
        %409 = vmatmul.bf16.gmra.mxu0 %v325
        %v410 = vpop.f32.mrf.mxu0
        %v411 = vadd.f32 0.0, %v410
        %v412 = vpop.f32.mrf.mxu0
        %v413 = vadd.f32 0.0, %v412
        %414 = vmatmul.bf16.gmra.mxu0 %v326
        %v415 = vpop.f32.mrf.mxu0
        %v416 = vadd.f32 0.0, %v415
        %v417 = vpop.f32.mrf.mxu0
        %v418 = vadd.f32 0.0, %v417
        %419 = vdwg.mxu0
        %v420 = vadd.f32 %v257, %v391
        %v421 = vadd.f32 %v258, %v393
        %v422 = vadd.f32 %v259, %v396
        %v423 = vadd.f32 %v260, %v398
        %v424 = vadd.f32 %v261, %v401
        %v425 = vadd.f32 %v262, %v403
        %v426 = vadd.f32 %v263, %v406
        %v427 = vadd.f32 %v264, %v408
        %v428 = vadd.f32 %v265, %v411
        %v429 = vadd.f32 %v266, %v413
        %v430 = vadd.f32 %v267, %v416
        %v431 = vadd.f32 %v268, %v418
        %432 = vst [vmem:[#allocation2] sm:$0xff] %v420
        %433 = vst [vmem:[#allocation2 + $0x8] sm:$0xff] %v421
        %434 = vst [vmem:[#allocation2 + $0x10] sm:$0xff] %v422
        %435 = vst [vmem:[#allocation2 + $0x18] sm:$0xff] %v423
        %436 = vst [vmem:[#allocation2 + $0x20] sm:$0xff] %v424
        %437 = vst [vmem:[#allocation2 + $0x28] sm:$0xff] %v425
        %438 = vst [vmem:[#allocation2 + $0x30] sm:$0xff] %v426
        %439 = vst [vmem:[#allocation2 + $0x38] sm:$0xff] %v427
        %440 = vst [vmem:[#allocation2 + $0x40] sm:$0xff] %v428
        %441 = vst [vmem:[#allocation2 + $0x48] sm:$0xff] %v429
        %442 = vst [vmem:[#allocation2 + $0x50] sm:$0xff] %v430
        %443 = vst [vmem:[#allocation2 + $0x58] sm:$0xff] %v431
        // Predicated region
        $region41: #{tpu_custom_call.1} parent=27 // pred_check
          %p444 = pneg %p241
        $region42: #{tpu_custom_call.1} parent=27 // pred_check_branch
          %446 = sbr.rel (%p444) target = $region44
        $region43: #{tpu_custom_call.1} parent=27 // pred_region
          %v447 = vld [vmem:[#allocation2] sm:$0xff]
          %v448 = vld [vmem:[#allocation2 + $0x8] sm:$0xff]
          %v449 = vld [vmem:[#allocation2 + $0x10] sm:$0xff]
          %v450 = vld [vmem:[#allocation2 + $0x18] sm:$0xff]
          %v451 = vld [vmem:[#allocation2 + $0x20] sm:$0xff]
          %v452 = vld [vmem:[#allocation2 + $0x28] sm:$0xff]
          %v453 = vld [vmem:[#allocation2 + $0x30] sm:$0xff]
          %v454 = vld [vmem:[#allocation2 + $0x38] sm:$0xff]
          %v455 = vld [vmem:[#allocation2 + $0x40] sm:$0xff]
          %v456 = vld [vmem:[#allocation2 + $0x48] sm:$0xff]
          %v457 = vld [vmem:[#allocation2 + $0x50] sm:$0xff]
          %v458 = vld [vmem:[#allocation2 + $0x58] sm:$0xff]
          %459 = vst [vmem:[%s237] sm:$0xff] %v447
          %460 = vst [vmem:[%s237 + $0x8] sm:$0xff] %v448
          %461 = vst [vmem:[%s237 + $0x10] sm:$0xff] %v449
          %462 = vst [vmem:[%s237 + $0x18] sm:$0xff] %v450
          %463 = vst [vmem:[%s237 + $0x20] sm:$0xff] %v451
          %464 = vst [vmem:[%s237 + $0x28] sm:$0xff] %v452
          %465 = vst [vmem:[%s237 + $0x30] sm:$0xff] %v453
          %466 = vst [vmem:[%s237 + $0x38] sm:$0xff] %v454
          %467 = vst [vmem:[%s237 + $0x40] sm:$0xff] %v455
          %468 = vst [vmem:[%s237 + $0x48] sm:$0xff] %v456
          %469 = vst [vmem:[%s237 + $0x50] sm:$0xff] %v457
          %470 = vst [vmem:[%s237 + $0x58] sm:$0xff] %v458
        $region44: #{tpu_custom_call.1} parent=27 // pred_fallthru
          _
        %s471 = sand.u32 %s109, 1
        %s472 = scalar_lea.sflag [#allocation5], %s471
        %s473 = sand.u32 %s109, 1
        %s474 = smul.addr %s473, 96
        %s475 = scalar_lea.vmem [#allocation8], %s474
        // Predicated region
        $region45: #{tpu_custom_call.1} parent=27 // pred_check
          %p476 = pneg %p119
        $region46: #{tpu_custom_call.1} parent=27 // pred_check_branch
          %478 = sbr.rel (%p476) target = $region48
        $region47: #{tpu_custom_call.1} parent=27 // pred_region
          %s479 = smul.u32 12, %s28
          %481 = vsyncadd %s472, 0
          %s482 = smul.addr %s479, 5
          %s483 = sadd.s32 %s27, %s482
          %s484 = smul.addr %s483, 8
          %s485 = scalar_lea.hbm %s2, %s484
          %s486 = sshll.u32 %s475, 4
          %s487 = int_to_ptr.vmem [resolvable:$true] %s486
          %s488 = sshll.u32 %s485, 4
          %s489 = int_to_ptr.hbm [resolvable:$true] %s488
          %494 = dma.vmem_to_hbm [thread:$0]  %s487, 1536, %s489, %s472, 128, 640, 8
        $region48: #{tpu_custom_call.1} parent=27 // pred_fallthru
          _
      $region28: #{tpu_custom_call.1} parent=5 // pred_fallthru
        _
      %p495 = scmp.le.s32.totalorder 2, %s17
      // Predicated region
      $region49: #{tpu_custom_call.1} parent=5 // pred_check
        %p496 = pneg %p495
      $region50: #{tpu_custom_call.1} parent=5 // pred_check_branch
        %498 = sbr.rel (%p496) target = $region52
      $region51: #{tpu_custom_call.1} parent=5 // pred_region
        %s499 = ssub.s32 %s17, 2
        // Predicated region
        $region53: #{tpu_custom_call.1} parent=51 // pred_check
          %p500 = pneg %p125
        $region54: #{tpu_custom_call.1} parent=51 // pred_check_branch
          %502 = sbr.rel (%p500) target = $region56
        $region55: #{tpu_custom_call.1} parent=51 // pred_region
          %s503 = sand.u32 %s110, 1
          %s504 = scalar_lea.sflag [#allocation5], %s503
          %s505 = sand.u32 %s110, 1
          %s506 = smul.addr %s505, 96
          %s507 = scalar_lea.vmem [#allocation8], %s506
          %509 = dma.done %s504, 1536
        $region56: #{tpu_custom_call.1} parent=51 // pred_fallthru
          _
      $region52: #{tpu_custom_call.1} parent=5 // pred_fallthru
        _
    $region6: #{tpu_custom_call.1} parent=1 // loop_footer
      %s21 = sadd.s32 1, %s17
    $region7: #{tpu_custom_call.1} parent=1 // loop_footer_branch
      %16 = sbr.rel target = $region3
    $region8: #{tpu_custom_call.1} parent=1 // loop_exit
      _
    %510 = vsyncpa [#allocation4], 1
    %s511 = scalar_lea.sflag [#allocation4], 1
    %512 = vsyncpa %s511, 1
    %513 = vsyncpa [#allocation7], 1
    %s514 = scalar_lea.sflag [#allocation7], 1
    %515 = vsyncpa %s514, 1
    %516 = vsyncpa [#allocation5], 1
    %s517 = scalar_lea.sflag [#allocation5], 1
    %518 = vsyncpa %s517, 1

</llo_original>
